<compile_context>
chip_gen: v7x
topology: tpu7x:2x2x1
jax: 0.10.0
libtpu: 0.0.40
codegen_flags: <defaults>
</compile_context>

<pallas_src>
import jax
import jax.numpy as jnp
from jax.experimental import pallas as pl
from jax.experimental.pallas import tpu as pltpu


def _round_up(x, m):
    return ((x + m - 1) // m) * m


def _actor_kernel(x_ref, w1_ref, w2_ref, w3_ref, bias_ref, mean_ref):
    # Hot path: 3 bf16 matmuls on the MXU with f32 accumulation; bias add / ReLU
    # run in f32 on the VPU.  Biases are packed into rows 0..2 of one (8, W) buffer.
    x = x_ref[...]
    biases = bias_ref[...]                       # (8, bw) f32, one full load
    fc1 = w1_ref.shape[1]
    fc2 = w2_ref.shape[1]
    n_pad = w3_ref.shape[1]
    b1 = biases[0:1, :fc1]
    b2 = biases[1:2, :fc2]
    b3 = biases[2:3, :n_pad]

    h1 = jnp.dot(x, w1_ref[...], preferred_element_type=jnp.float32) + b1
    h1 = jnp.maximum(h1, 0.0)
    h2 = jnp.dot(h1.astype(w2_ref.dtype), w2_ref[...],
                 preferred_element_type=jnp.float32) + b2
    h2 = jnp.maximum(h2, 0.0)
    mean = jnp.dot(h2.astype(w3_ref.dtype), w3_ref[...],
                   preferred_element_type=jnp.float32) + b3
    mean_ref[...] = mean.astype(mean_ref.dtype)


def actor_forward(x, w1, b1, w2, b2, w3, b3, log_std, *, tile_b=128):
    """Fused actor MLP forward. Weights stored as [in, out]. Returns (mean [B, A], std [A])."""
    B, input_dim = x.shape
    fc1 = w1.shape[1]
    fc2 = w2.shape[1]
    n_actions = w3.shape[1]

    # Lane-dense padding of the final projection (avoid 4-wide masked stores).
    n_pad = _round_up(n_actions, 128)
    w3_p = jnp.zeros((fc2, n_pad), w3.dtype).at[:, :n_actions].set(w3)

    # Pack the three biases into a single small f32 VMEM operand (8 sublanes = 1 vreg tile).
    bw = _round_up(max(fc1, fc2, n_pad), 128)
    biases = (jnp.zeros((8, bw), jnp.float32)
              .at[0, :fc1].set(b1.astype(jnp.float32))
              .at[1, :fc2].set(b2.astype(jnp.float32))
              .at[2, :n_actions].set(b3.astype(jnp.float32)))

    # bf16 weights / activations; f32 accumulation happens inside the kernel.
    xb = x.astype(jnp.bfloat16)
    w1b = w1.astype(jnp.bfloat16)
    w2b = w2.astype(jnp.bfloat16)
    w3b = w3_p.astype(jnp.bfloat16)

    # Pad the batch to a whole number of tiles.
    b_pad = _round_up(max(B, 1), tile_b)
    if b_pad != B:
        xb = jnp.zeros((b_pad, input_dim), xb.dtype).at[:B].set(xb)

    grid = (b_pad // tile_b,)
    mean_padded = pl.pallas_call(
        _actor_kernel,
        out_shape=jax.ShapeDtypeStruct((b_pad, n_pad), jnp.float32),
        grid=grid,
        in_specs=[
            pl.BlockSpec((tile_b, input_dim), lambda i: (i, 0)),   # x: tiled on batch
            pl.BlockSpec((input_dim, fc1), lambda i: (0, 0)),      # W1: resident
            pl.BlockSpec((fc1, fc2), lambda i: (0, 0)),            # W2: resident
            pl.BlockSpec((fc2, n_pad), lambda i: (0, 0)),          # W3 (zero-padded)
            pl.BlockSpec((8, bw), lambda i: (0, 0)),               # packed biases
        ],
        out_specs=pl.BlockSpec((tile_b, n_pad), lambda i: (i, 0)),
        compiler_params=pltpu.CompilerParams(
            dimension_semantics=("parallel",),
            vmem_limit_bytes=32 * 1024 * 1024,
        ),
    )(xb, w1b, w2b, w3b, biases)

    mean = mean_padded[:B, :n_actions]
    # std = exp(log_std) is batch-independent: keep it out of the kernel.
    std = jnp.exp(log_std.astype(jnp.float32))
    return mean, std
    # TODO(synk): for per-rollout-step calls with fixed weights, keep the ~150 KB of
    # bf16 weights VMEM-resident across pallas_calls (P10 semaphore/VMEM-output
    # pattern) instead of re-DMAing them each call.


def xavier_uniform(key, fan_in, fan_out, dtype=jnp.float32):
    # Matches nn.init.xavier_uniform_ semantics; stored as [in, out].
    bound = jnp.sqrt(6.0 / (fan_in + fan_out))
    return jax.random.uniform(key, (fan_in, fan_out), dtype, -bound, bound)


if __name__ == "__main__":
    # Shapes consistent with the module: input_dims=(32,), fc=256, n_actions=4.
    # batch=200 is NOT a multiple of the 128-row tile -> exercises batch padding
    # and the 2-tile grid.
    batch, input_dim, fc1_dim, fc2_dims, n_actions = 200, 32, 256, 256, 4

    key = jax.random.PRNGKey(0)
    k_x, k1, k2, k3 = jax.random.split(key, 4)

    x = jax.random.normal(k_x, (batch, input_dim), jnp.float32)

    # Deterministic parameter init (xavier_uniform weights, zero biases,
    # log_std = zeros as in nn.Parameter(T.zeros(n_actions))).
    w1 = xavier_uniform(k1, input_dim, fc1_dim)
    b1 = jnp.zeros((fc1_dim,), jnp.float32)
    w2 = xavier_uniform(k2, fc1_dim, fc2_dims)
    b2 = jnp.zeros((fc2_dims,), jnp.float32)
    w3 = xavier_uniform(k3, fc2_dims, n_actions)
    b3 = jnp.zeros((n_actions,), jnp.float32)
    log_std = jnp.zeros((n_actions,), jnp.float32)

    mean, std = actor_forward(x, w1, b1, w2, b2, w3, b3, log_std)
    jax.block_until_ready((mean, std))

    # Reference with the same bf16-weight / f32-accumulate recipe (apples-to-apples).
    bf = jnp.bfloat16
    h1 = jnp.maximum(jnp.dot(x.astype(bf), w1.astype(bf),
                             preferred_element_type=jnp.float32) + b1, 0.0)
    h2 = jnp.maximum(jnp.dot(h1.astype(bf), w2.astype(bf),
                             preferred_element_type=jnp.float32) + b2, 0.0)
    mean_ref = jnp.dot(h2.astype(bf), w3.astype(bf),
                       preferred_element_type=jnp.float32) + b3
    std_ref = jnp.exp(log_std)

    # Pure-f32 reference of the original module semantics (loose check: bf16 error).
    h1_f = jnp.maximum(x @ w1 + b1, 0.0)
    h2_f = jnp.maximum(h1_f @ w2 + b2, 0.0)
    mean_f32 = h2_f @ w3 + b3

    assert mean.shape == (batch, n_actions) and std.shape == (n_actions,)
    assert jnp.allclose(mean, mean_ref, atol=2e-3, rtol=2e-3)
    assert jnp.allclose(mean, mean_f32, atol=5e-2, rtol=5e-2)
    assert jnp.allclose(std, std_ref, atol=1e-6)

    # TODO(synk): sample_normal (Normal sampling / tanh / log_prob) is host-side
    # policy logic outside forward(); not part of the kernel.
    print("KERNEL_OK")
</pallas_src>

<mosaic_0001>
module attributes {stable_mosaic.version = 11 : i64} {
  func.func @_actor_kernel(%arg0: i32, %arg1: memref<128x32xbf16, #tpu.memory_space<vmem>>, %arg2: memref<32x256xbf16, #tpu.memory_space<vmem>>, %arg3: memref<256x256xbf16, #tpu.memory_space<vmem>>, %arg4: memref<256x128xbf16, #tpu.memory_space<vmem>>, %arg5: memref<8x256xf32, #tpu.memory_space<vmem>>, %arg6: memref<128x128xf32, #tpu.memory_space<vmem>>) attributes {dimension_semantics = [#tpu.dimension_semantics<parallel>], iteration_bounds = array<i64: 2>, scalar_prefetch = 0 : i64, scratch_operands = 0 : i64, tpu.core_type = #tpu.core_type<tc>, window_params = [{transform_indices = @transform_0, window_bounds = array<i64: 128, 32>}, {pipeline_mode = #tpu.pipeline_mode<synchronous>, transform_indices = @transform_1, window_bounds = array<i64: 32, 256>}, {pipeline_mode = #tpu.pipeline_mode<synchronous>, transform_indices = @transform_2, window_bounds = array<i64: 256, 256>}, {pipeline_mode = #tpu.pipeline_mode<synchronous>, transform_indices = @transform_3, window_bounds = array<i64: 256, 128>}, {pipeline_mode = #tpu.pipeline_mode<synchronous>, transform_indices = @transform_4, window_bounds = array<i64: 8, 256>}, {transform_indices = @transform_5, window_bounds = array<i64: 128, 128>}]} {
    %c0 = arith.constant 0 : index
    %c0_0 = arith.constant 0 : index
    %0 = vector.load %arg1[%c0, %c0_0] : memref<128x32xbf16, #tpu.memory_space<vmem>>, vector<128x32xbf16>
    %c0_1 = arith.constant 0 : index
    %c0_2 = arith.constant 0 : index
    %1 = vector.load %arg5[%c0_1, %c0_2] : memref<8x256xf32, #tpu.memory_space<vmem>>, vector<8x256xf32>
    %2 = vector.extract_strided_slice %1 {offsets = [0, 0], sizes = [1, 256], strides = [1, 1]} : vector<8x256xf32> to vector<1x256xf32>
    %3 = vector.extract_strided_slice %1 {offsets = [1, 0], sizes = [1, 256], strides = [1, 1]} : vector<8x256xf32> to vector<1x256xf32>
    %4 = vector.extract_strided_slice %1 {offsets = [2, 0], sizes = [1, 128], strides = [1, 1]} : vector<8x256xf32> to vector<1x128xf32>
    %c0_3 = arith.constant 0 : index
    %c0_4 = arith.constant 0 : index
    %5 = vector.load %arg2[%c0_3, %c0_4] : memref<32x256xbf16, #tpu.memory_space<vmem>>, vector<32x256xbf16>
    %cst = arith.constant dense<0.000000e+00> : vector<128x256xf32>
    %6 = tpu.matmul %0, %5, %cst {dimension_numbers = #tpu.dot_dimension_numbers<[1], [0], [0], [1], [0, 0, 1, 1], [], []>} : vector<128x32xbf16>, vector<32x256xbf16>, vector<128x256xf32> -> vector<128x256xf32>
    %7 = vector.broadcast %2 : vector<1x256xf32> to vector<128x256xf32>
    %8 = arith.addf %6, %7 : vector<128x256xf32>
    %cst_5 = arith.constant 0.000000e+00 : f32
    %9 = vector.broadcast %cst_5 : f32 to vector<128x256xf32>
    %10 = arith.maximumf %8, %9 : vector<128x256xf32>
    %11 = arith.truncf %10 : vector<128x256xf32> to vector<128x256xbf16>
    %c0_6 = arith.constant 0 : index
    %c0_7 = arith.constant 0 : index
    %12 = vector.load %arg3[%c0_6, %c0_7] : memref<256x256xbf16, #tpu.memory_space<vmem>>, vector<256x256xbf16>
    %cst_8 = arith.constant dense<0.000000e+00> : vector<128x256xf32>
    %13 = tpu.matmul %11, %12, %cst_8 {dimension_numbers = #tpu.dot_dimension_numbers<[1], [0], [0], [1], [0, 0, 1, 1], [], []>} : vector<128x256xbf16>, vector<256x256xbf16>, vector<128x256xf32> -> vector<128x256xf32>
    %14 = vector.broadcast %3 : vector<1x256xf32> to vector<128x256xf32>
    %15 = arith.addf %13, %14 : vector<128x256xf32>
    %cst_9 = arith.constant 0.000000e+00 : f32
    %16 = vector.broadcast %cst_9 : f32 to vector<128x256xf32>
    %17 = arith.maximumf %15, %16 : vector<128x256xf32>
    %18 = arith.truncf %17 : vector<128x256xf32> to vector<128x256xbf16>
    %c0_10 = arith.constant 0 : index
    %c0_11 = arith.constant 0 : index
    %19 = vector.load %arg4[%c0_10, %c0_11] : memref<256x128xbf16, #tpu.memory_space<vmem>>, vector<256x128xbf16>
    %cst_12 = arith.constant dense<0.000000e+00> : vector<128x128xf32>
    %20 = tpu.matmul %18, %19, %cst_12 {dimension_numbers = #tpu.dot_dimension_numbers<[1], [0], [0], [1], [0, 0, 1, 1], [], []>} : vector<128x256xbf16>, vector<256x128xbf16>, vector<128x128xf32> -> vector<128x128xf32>
    %21 = vector.broadcast %4 : vector<1x128xf32> to vector<128x128xf32>
    %22 = arith.addf %20, %21 : vector<128x128xf32>
    %c0_13 = arith.constant 0 : index
    %c0_14 = arith.constant 0 : index
    %23 = vector.load %arg6[%c0_13, %c0_14] : memref<128x128xf32, #tpu.memory_space<vmem>>, vector<128x128xf32>
    tpu.vector_store %arg6[%c0_13, %c0_14], %22 {strides = array<i32>} : memref<128x128xf32, #tpu.memory_space<vmem>>, vector<128x128xf32>,
    return
  }
  func.func @transform_0(%arg0: i32) -> (i32, i32) {
    %c0_i32 = arith.constant 0 : i32
    %c0_i32_0 = arith.constant 0 : i32
    return %arg0, %c0_i32 : i32, i32
  }
  func.func @transform_1(%arg0: i32) -> (i32, i32) {
    %c0_i32 = arith.constant 0 : i32
    %c0_i32_0 = arith.constant 0 : i32
    %c0_i32_1 = arith.constant 0 : i32
    return %c0_i32, %c0_i32_0 : i32, i32
  }
  func.func @transform_2(%arg0: i32) -> (i32, i32) {
    %c0_i32 = arith.constant 0 : i32
    %c0_i32_0 = arith.constant 0 : i32
    %c0_i32_1 = arith.constant 0 : i32
    return %c0_i32, %c0_i32_0 : i32, i32
  }
  func.func @transform_3(%arg0: i32) -> (i32, i32) {
    %c0_i32 = arith.constant 0 : i32
    %c0_i32_0 = arith.constant 0 : i32
    %c0_i32_1 = arith.constant 0 : i32
    return %c0_i32, %c0_i32_0 : i32, i32
  }
  func.func @transform_4(%arg0: i32) -> (i32, i32) {
    %c0_i32 = arith.constant 0 : i32
    %c0_i32_0 = arith.constant 0 : i32
    %c0_i32_1 = arith.constant 0 : i32
    return %c0_i32, %c0_i32_0 : i32, i32
  }
  func.func @transform_5(%arg0: i32) -> (i32, i32) {
    %c0_i32 = arith.constant 0 : i32
    %c0_i32_0 = arith.constant 0 : i32
    return %arg0, %c0_i32 : i32, i32
  }
}

</mosaic_0001>

<llo_original>
// kernel: tpu_custom_call.1
$region0: #{tpu_custom_call.1}
  #allocation0 [shape = 'u32[]', space=smem, size = 0x4, offset = 0x4, fixed_abs, tag = 'smem constant byte address 0x4 - core index']
  #allocation1 [shape = 'u32[144,128]{1,0:T(1,128)}', space=vmem, size = 0x12000, scoped, tag = 'internal scratch']
  %s0 = inlined_call_operand.vmem [shape: bf16[256,32], index: 0, kind: input, shape index: {}]
  %s1 = inlined_call_operand.vmem [shape: bf16[32,256], index: 1, kind: input, shape index: {}]
  %s2 = inlined_call_operand.hbm [shape: bf16[256,256], index: 2, kind: input, shape index: {}]
  %s3 = inlined_call_operand.vmem [shape: bf16[256,128], index: 3, kind: input, shape index: {}]
  %s4 = inlined_call_operand.hbm [shape: f32[8,256], index: 4, kind: input, shape index: {}]
  %s5 = inlined_call_operand.hbm [shape: f32[256,128], index: 5, kind: output, shape index: {}]
  %s6 = sld [smem:[#allocation0]]
  $region61: #{tpu_custom_call.1} parent=0
    _
  %s8 = ssub.s32 1, %s6
  %s9 = scalar_select 0, %s8, %s6
  $region1: #{tpu_custom_call.1} parent=0
    #allocation2 [shape = 'u8[131072]{0}', space=vmem, size = 0x20000, scoped, tag = 'input window, operand 2, single buffered']
    #allocation3 [shape = 's32[2]{0}', space=sflag, size = 0x8, scoped, tag = 'scoped memory for tpu_custom_call.1']
    #allocation4 [shape = 's32[2]{0}', space=sflag, size = 0x8, scoped, tag = 'scoped memory for tpu_custom_call.1']
    #allocation5 [shape = 'u8[8192]{0}', space=vmem, size = 0x2000, scoped, tag = 'input window, operand 4, single buffered']
    #allocation6 [shape = 's32[1]{0}', space=sflag, size = 0x4, scoped, tag = 'scoped memory for tpu_custom_call.1']
    #allocation7 [shape = 'u8[131072]{0}', space=vmem, size = 0x20000, scoped, tag = 'output window, operand 0']
    %10 = vsyncpa [#allocation3], 0
    %11 = vsyncpa [#allocation6], 0
    %12 = vsyncpa [#allocation4], 0
    %s13 = scalar_lea.sflag [#allocation4], 1
    %14 = vsyncpa %s13, 0
    loop: start=0, step=1, limit=4
    $region2: #{tpu_custom_call.1} parent=1 // loop_pre_header
      _
    $region3: #{tpu_custom_call.1} parent=1 // loop_header
      %s16 = sphi 0, %s20
      %p17 = scmp.ge.s32.totalorder %s16, 4
      %s26 = sphi 0, %s28
      %s29 = sphi 0, %s26
      %s30 = sphi 0, %s29
      %s46 = sphi 0, %s30
      %s50 = sphi 0, %s50
      %s52 = sphi 0, %s50
      %s53 = sphi 0, %s52
      %s67 = sphi 0, %s53
      %s71 = sphi 0, %s71
      %s73 = sphi 0, %s71
      %s74 = sphi 0, %s73
      %s88 = sphi 0, %s74
      %s92 = sphi 0, %s92
      %s94 = sphi 0, %s92
      %s95 = sphi 0, %s94
      %s109 = sphi 0, %s95
      %s113 = sphi 0, %s113
      %s115 = sphi 0, %s113
      %s116 = sphi 0, %s115
      %s130 = sphi 0, %s116
      %s136 = sphi 0, %s138
      %s139 = sphi 0, %s136
      %s140 = sphi 0, %s139
      %s156 = sphi 0, %s140
    $region4: #{tpu_custom_call.1} parent=1 // loop_header_branch
      %19 = sbr.rel (%p17) target = $region8
    $region5: #{tpu_custom_call.1} parent=1 // loop_body
      %s21 = ssub.s32 %s16, 1
      %s22 = ssub.s32 %s16, 2
      %s23 = sadd.s32 %s16, 1
      %s24 = ssub.s32 %s16, %s23
      %p25 = scmp.eq.s32.totalorder %s24, 0
      %s27 = sadd.s32 %s26, 1
      %s28 = scalar_select %p25, %s26, %s27
      %p31 = pneg %p25
      %p32 = scmp.eq.s32.totalorder %s16, 1
      %p33 = por %p31, %p32
      %p34 = scmp.ne.s32.totalorder %s26, %s29
      %p35 = scmp.eq.s32.totalorder %s16, 0
      %p36 = por %p34, %p35
      %p37 = scmp.ne.s32.totalorder %s26, %s29
      %p38 = scmp.eq.s32.totalorder %s21, 1
      %p39 = por %p37, %p38
      %p40 = scmp.ne.s32.totalorder %s29, %s30
      %p41 = scmp.eq.s32.totalorder %s21, 0
      %p42 = por %p40, %p41
      %p43 = scmp.ne.s32.totalorder %s29, %s30
      %p44 = scmp.eq.s32.totalorder %s22, 1
      %p45 = por %p43, %p44
      %p47 = scmp.ne.s32.totalorder %s30, %s46
      %p48 = scmp.eq.s32.totalorder %s22, 0
      %p49 = por %p47, %p48
      %s51 = sadd.s32 %s50, 1
      %p54 = scmp.eq.s32.totalorder %s16, 1
      %p55 = scmp.ne.s32.totalorder %s50, %s52
      %p56 = scmp.eq.s32.totalorder %s16, 0
      %p57 = por %p55, %p56
      %p58 = scmp.ne.s32.totalorder %s50, %s52
      %p59 = scmp.eq.s32.totalorder %s21, 1
      %p60 = por %p58, %p59
      %p61 = scmp.ne.s32.totalorder %s52, %s53
      %p62 = scmp.eq.s32.totalorder %s21, 0
      %p63 = por %p61, %p62
      %p64 = scmp.ne.s32.totalorder %s52, %s53
      %p65 = scmp.eq.s32.totalorder %s22, 1
      %p66 = por %p64, %p65
      %p68 = scmp.ne.s32.totalorder %s53, %s67
      %p69 = scmp.eq.s32.totalorder %s22, 0
      %p70 = por %p68, %p69
      %s72 = sadd.s32 %s71, 1
      %p75 = scmp.eq.s32.totalorder %s16, 1
      %p76 = scmp.ne.s32.totalorder %s71, %s73
      %p77 = scmp.eq.s32.totalorder %s16, 0
      %p78 = por %p76, %p77
      %p79 = scmp.ne.s32.totalorder %s71, %s73
      %p80 = scmp.eq.s32.totalorder %s21, 1
      %p81 = por %p79, %p80
      %p82 = scmp.ne.s32.totalorder %s73, %s74
      %p83 = scmp.eq.s32.totalorder %s21, 0
      %p84 = por %p82, %p83
      %p85 = scmp.ne.s32.totalorder %s73, %s74
      %p86 = scmp.eq.s32.totalorder %s22, 1
      %p87 = por %p85, %p86
      %p89 = scmp.ne.s32.totalorder %s74, %s88
      %p90 = scmp.eq.s32.totalorder %s22, 0
      %p91 = por %p89, %p90
      %s93 = sadd.s32 %s92, 1
      %p96 = scmp.eq.s32.totalorder %s16, 1
      %p97 = scmp.ne.s32.totalorder %s92, %s94
      %p98 = scmp.eq.s32.totalorder %s16, 0
      %p99 = por %p97, %p98
      %p100 = scmp.ne.s32.totalorder %s92, %s94
      %p101 = scmp.eq.s32.totalorder %s21, 1
      %p102 = por %p100, %p101
      %p103 = scmp.ne.s32.totalorder %s94, %s95
      %p104 = scmp.eq.s32.totalorder %s21, 0
      %p105 = por %p103, %p104
      %p106 = scmp.ne.s32.totalorder %s94, %s95
      %p107 = scmp.eq.s32.totalorder %s22, 1
      %p108 = por %p106, %p107
      %p110 = scmp.ne.s32.totalorder %s95, %s109
      %p111 = scmp.eq.s32.totalorder %s22, 0
      %p112 = por %p110, %p111
      %s114 = sadd.s32 %s113, 1
      %p117 = scmp.eq.s32.totalorder %s16, 1
      %p118 = scmp.ne.s32.totalorder %s113, %s115
      %p119 = scmp.eq.s32.totalorder %s16, 0
      %p120 = por %p118, %p119
      %p121 = scmp.ne.s32.totalorder %s113, %s115
      %p122 = scmp.eq.s32.totalorder %s21, 1
      %p123 = por %p121, %p122
      %p124 = scmp.ne.s32.totalorder %s115, %s116
      %p125 = scmp.eq.s32.totalorder %s21, 0
      %p126 = por %p124, %p125
      %p127 = scmp.ne.s32.totalorder %s115, %s116
      %p128 = scmp.eq.s32.totalorder %s22, 1
      %p129 = por %p127, %p128
      %p131 = scmp.ne.s32.totalorder %s116, %s130
      %p132 = scmp.eq.s32.totalorder %s22, 0
      %p133 = por %p131, %p132
      %s134 = ssub.s32 %s16, %s23
      %p135 = scmp.eq.s32.totalorder %s134, 0
      %s137 = sadd.s32 %s136, 1
      %s138 = scalar_select %p135, %s136, %s137
      %p141 = pneg %p135
      %p142 = scmp.eq.s32.totalorder %s16, 1
      %p143 = por %p141, %p142
      %p144 = scmp.ne.s32.totalorder %s136, %s139
      %p145 = scmp.eq.s32.totalorder %s16, 0
      %p146 = por %p144, %p145
      %p147 = scmp.ne.s32.totalorder %s136, %s139
      %p148 = scmp.eq.s32.totalorder %s21, 1
      %p149 = por %p147, %p148
      %p150 = scmp.ne.s32.totalorder %s139, %s140
      %p151 = scmp.eq.s32.totalorder %s21, 0
      %p152 = por %p150, %p151
      %p153 = scmp.ne.s32.totalorder %s139, %s140
      %p154 = scmp.eq.s32.totalorder %s22, 1
      %p155 = por %p153, %p154
      %p157 = scmp.ne.s32.totalorder %s140, %s156
      %p158 = scmp.eq.s32.totalorder %s22, 0
      %p159 = por %p157, %p158
      %p160 = scmp.le.s32.totalorder 1, %s16
      %p161 = scmp.lt.s32.totalorder %s16, 3
      %p162 = pnand %p160, %p161
      %p163 = pneg %p162
      // Predicated region
      $region9: #{tpu_custom_call.1} parent=5 // pred_check
        _
      $region10: #{tpu_custom_call.1} parent=5 // pred_check_branch
        %165 = sbr.rel (%p162) target = $region12
      $region11: #{tpu_custom_call.1} parent=5 // pred_region
        %s166 = ssub.s32 %s16, 1
        // Predicated region
        $region13: #{tpu_custom_call.1} parent=11 // pred_check
          %p167 = pneg %p63
        $region14: #{tpu_custom_call.1} parent=11 // pred_check_branch
          %169 = sbr.rel (%p167) target = $region16
        $region15: #{tpu_custom_call.1} parent=11 // pred_region
          _
        $region16: #{tpu_custom_call.1} parent=11 // pred_fallthru
          _
        // Predicated region
        $region17: #{tpu_custom_call.1} parent=11 // pred_check
          %p170 = pneg %p84
        $region18: #{tpu_custom_call.1} parent=11 // pred_check_branch
          %172 = sbr.rel (%p170) target = $region20
        $region19: #{tpu_custom_call.1} parent=11 // pred_region
          %s174 = ssub.s32 4096, 4096
          %175 = vsyncadd [#allocation3], %s174
          %s176 = sshll.u32 [#allocation2], 4
          %s177 = int_to_ptr.vmem [resolvable:$true] %s176
          %182 = dma.hbm_to_vmem [thread:$0]  %s2, 4096, %s177, [#allocation3], 128, 128, 8
        $region20: #{tpu_custom_call.1} parent=11 // pred_fallthru
          _
        // Predicated region
        $region21: #{tpu_custom_call.1} parent=11 // pred_check
          %p183 = pneg %p105
        $region22: #{tpu_custom_call.1} parent=11 // pred_check_branch
          %185 = sbr.rel (%p183) target = $region24
        $region23: #{tpu_custom_call.1} parent=11 // pred_region
          _
        $region24: #{tpu_custom_call.1} parent=11 // pred_fallthru
          _
        // Predicated region
        $region25: #{tpu_custom_call.1} parent=11 // pred_check
          %p186 = pneg %p126
        $region26: #{tpu_custom_call.1} parent=11 // pred_check_branch
          %188 = sbr.rel (%p186) target = $region28
        $region27: #{tpu_custom_call.1} parent=11 // pred_region
          %s190 = ssub.s32 256, 256
          %191 = vsyncadd [#allocation6], %s190
          %s193 = sshll.u32 [#allocation5], 4
          %s194 = int_to_ptr.vmem [resolvable:$true] %s193
          %196 = dma.hbm_to_vmem [thread:$0]  %s4, 256, %s194, [#allocation6]
        $region28: #{tpu_custom_call.1} parent=11 // pred_fallthru
          _
      $region12: #{tpu_custom_call.1} parent=5 // pred_fallthru
        _
      %p197 = scmp.lt.s32.totalorder %s16, 2
      // Predicated region
      $region29: #{tpu_custom_call.1} parent=5 // pred_check
        %p198 = pneg %p197
      $region30: #{tpu_custom_call.1} parent=5 // pred_check_branch
        %200 = sbr.rel (%p198) target = $region32
      $region31: #{tpu_custom_call.1} parent=5 // pred_region
        // Predicated region
        $region33: #{tpu_custom_call.1} parent=31 // pred_check
          %p201 = pneg %p36
        $region34: #{tpu_custom_call.1} parent=31 // pred_check_branch
          %203 = sbr.rel (%p201) target = $region36
        $region35: #{tpu_custom_call.1} parent=31 // pred_region
          %s204 = smul.u32 16, %s16
          %p205 = scmp.lt.s32.totalorder %s204, 31
          %s206 = scalar_select %p205, %s204, 31
          %s207 = smul.addr %s206, 4
          %s208 = scalar_lea.vmem %s0, %s207
          %s209 = smul.u32 16, %s16
        $region36: #{tpu_custom_call.1} parent=31 // pred_fallthru
          _
      $region32: #{tpu_custom_call.1} parent=5 // pred_fallthru
        _
      %p210 = scmp.le.s32.totalorder 1, %s16
      %p211 = scmp.lt.s32.totalorder %s16, 3
      %p212 = pnand %p210, %p211
      %p213 = pneg %p212
      // Predicated region
      $region37: #{tpu_custom_call.1} parent=5 // pred_check
        _
      $region38: #{tpu_custom_call.1} parent=5 // pred_check_branch
        %215 = sbr.rel (%p212) target = $region40
      $region39: #{tpu_custom_call.1} parent=5 // pred_region
        %s216 = ssub.s32 %s16, 1
        // Predicated region
        $region41: #{tpu_custom_call.1} parent=39 // pred_check
          %p217 = pneg %p84
        $region42: #{tpu_custom_call.1} parent=39 // pred_check_branch
          %219 = sbr.rel (%p217) target = $region44
        $region43: #{tpu_custom_call.1} parent=39 // pred_region
          %220 = dma.done [#allocation3], 4096
        $region44: #{tpu_custom_call.1} parent=39 // pred_fallthru
          _
        // Predicated region
        $region45: #{tpu_custom_call.1} parent=39 // pred_check
          %p221 = pneg %p126
        $region46: #{tpu_custom_call.1} parent=39 // pred_check_branch
          %223 = sbr.rel (%p221) target = $region48
        $region47: #{tpu_custom_call.1} parent=39 // pred_region
          %224 = dma.done [#allocation6], 256
        $region48: #{tpu_custom_call.1} parent=39 // pred_fallthru
          _
        %s225 = smul.u32 16, %s21
        %p226 = scmp.lt.s32.totalorder %s225, 31
        %s227 = scalar_select %p226, %s225, 31
        %s228 = smul.addr %s227, 4
        %s229 = scalar_lea.vmem %s0, %s228
        %p230 = pneg %p42
        %p231 = pneg %p39
        %p232 = pneg %p63
        %p233 = pneg %p60
        %p234 = pneg %p84
        %p235 = pneg %p81
        %p236 = pneg %p105
        %p237 = pneg %p102
        %p238 = pneg %p126
        %p239 = pneg %p123
        %p240 = pneg %p152
        %p241 = pneg %p149
        %s242 = sand.u32 %s139, 1
        %s243 = scalar_lea.sflag [#allocation4], %s242
        %s244 = sand.u32 %s139, 1
        %s245 = smul.addr %s244, 128
        %s246 = scalar_lea.vmem [#allocation7], %s245
        %s247 = smul.u32 16, %s21
        %p248 = scmp.lt.s32.totalorder %s247, 31
        %s249 = scalar_select %p248, %s247, 31
        %s250 = smul.addr %s249, 4
        %s251 = scalar_lea.vmem %s0, %s250
        %s252 = smul.u32 16, %s21
        %s253 = smul.u32 16, %s21
        %v255 = vld [vmem:[%s251] sm:$0xf]
        %v256 = vld [vmem:[%s251 + $0x4] sm:$0xf]
        %v257 = vld [vmem:[%s251 + $0x8] sm:$0xf]
        %v258 = vld [vmem:[%s251 + $0xc] sm:$0xf]
        %v259 = vld [vmem:[%s251 + $0x10] sm:$0xf]
        %v260 = vld [vmem:[%s251 + $0x14] sm:$0xf]
        %v261 = vld [vmem:[%s251 + $0x18] sm:$0xf]
        %v262 = vld [vmem:[%s251 + $0x1c] sm:$0xf]
        %v263 = vld [vmem:[%s251 + $0x20] sm:$0xf]
        %v264 = vld [vmem:[%s251 + $0x24] sm:$0xf]
        %v265 = vld [vmem:[%s251 + $0x28] sm:$0xf]
        %v266 = vld [vmem:[%s251 + $0x2c] sm:$0xf]
        %v267 = vld [vmem:[%s251 + $0x30] sm:$0xf]
        %v268 = vld [vmem:[%s251 + $0x34] sm:$0xf]
        %v269 = vld [vmem:[%s251 + $0x38] sm:$0xf]
        %v270 = vld [vmem:[%s251 + $0x3c] sm:$0xf]
        %v271 = vld [vmem:[#allocation5] sm:$0xff]
        %v272 = vld [vmem:[#allocation5 + $0x8] sm:$0xff]
        %v273 = vld [vmem:[%s1] sm:$0xff]
        %v274 = vld [vmem:[%s1 + $0x8] sm:$0xff]
        %v275 = vld [vmem:[%s1 + $0x10] sm:$0xff]
        %v276 = vld [vmem:[%s1 + $0x18] sm:$0xff]
        %v277 = vlaneseq
        %v278 = vshrl.u32 %v277, 7
        %v279 = vsub.s32 0, %v278
        %v280 = vrot.slane %v271, %v279
        %v281 = vlaneseq
        %v282 = vshrl.u32 %v281, 7
        %v283 = vsub.s32 0, %v282
        %v284 = vrot.slane %v272, %v283
        %v301 = vunpack.c.l.b16 %v255
        %v302 = vunpack.c.l.b16 %v256
        %v303 = vunpack.c.l.b16 %v257
        %v304 = vunpack.c.l.b16 %v258
        %v305 = vunpack.c.l.b16 %v259
        %v306 = vunpack.c.l.b16 %v260
        %v307 = vunpack.c.l.b16 %v261
        %v308 = vunpack.c.l.b16 %v262
        %v309 = vunpack.c.l.b16 %v263
        %v310 = vunpack.c.l.b16 %v264
        %v311 = vunpack.c.l.b16 %v265
        %v312 = vunpack.c.l.b16 %v266
        %v313 = vunpack.c.l.b16 %v267
        %v314 = vunpack.c.l.b16 %v268
        %v315 = vunpack.c.l.b16 %v269
        %v316 = vunpack.c.l.b16 %v270
        %v317 = vpack.c.b16 %v302, %v301
        %v318 = vpack.c.b16 %v304, %v303
        %v319 = vpack.c.b16 %v306, %v305
        %v320 = vpack.c.b16 %v308, %v307
        %v321 = vpack.c.b16 %v310, %v309
        %v322 = vpack.c.b16 %v312, %v311
        %v323 = vpack.c.b16 %v314, %v313
        %v324 = vpack.c.b16 %v316, %v315
        %v329 = vunpack.c.l.b16 %v273
        %v330 = vunpack.c.h.b16 %v273
        %v331 = vunpack.c.l.b16 %v274
        %v332 = vunpack.c.h.b16 %v274
        %v333 = vunpack.c.l.b16 %v275
        %v334 = vunpack.c.h.b16 %v275
        %v335 = vunpack.c.l.b16 %v276
        %v336 = vunpack.c.h.b16 %v276
        %v337 = vpack.c.b16 %v331, %v329
        %v338 = vpack.c.b16 %v332, %v330
        %v339 = vpack.c.b16 %v335, %v333
        %v340 = vpack.c.b16 %v336, %v334
        %vm345 = vcmask 261120
        %v347 = vsel %vm345, %v317, 0
        %v350 = vsel %vm345, %v318, 0
        %v353 = vsel %vm345, %v319, 0
        %v356 = vsel %vm345, %v320, 0
        %v359 = vsel %vm345, %v321, 0
        %v362 = vsel %vm345, %v322, 0
        %v365 = vsel %vm345, %v323, 0
        %v368 = vsel %vm345, %v324, 0
        %370 = vmatprep.subr.bf16.mxu0 %v338
        %371 = vmatpush1.bf16.msra.mxu0 %v337
        %372 = vmatprep.subr.bf16.mxu0 %v340
        %373 = vmatpush1.bf16.msra.mxu0 %v339
        %374 = vmatprep.subr.bf16.mxu0 0
        %375 = vmatpush1.bf16.msra.mxu0 0
        %376 = vmatprep.subr.bf16.mxu0 0
        %377 = vmatpush1.bf16.msra.mxu0 0
        %378 = vmatprep.subr.bf16.mxu0 0
        %379 = vmatpush1.bf16.msra.mxu0 0
        %380 = vmatprep.subr.bf16.mxu0 0
        %381 = vmatpush1.bf16.msra.mxu0 0
        %382 = vmatprep.subr.bf16.mxu0 0
        %383 = vmatpush1.bf16.msra.mxu0 0
        %384 = vmatprep.subr.bf16.mxu0 0
        %385 = vmatpush1.bf16.msra.mxu0 0
        %386 = vmatprep.subr.bf16.mxu0 0
        %387 = vmatpush1.bf16.msra.mxu0 0
        %388 = vmatprep.subr.bf16.mxu0 0
        %389 = vmatpush1.bf16.msra.mxu0 0
        %390 = vmatprep.subr.bf16.mxu0 0
        %391 = vmatpush1.bf16.msra.mxu0 0
        %392 = vmatprep.subr.bf16.mxu0 0
        %393 = vmatpush1.bf16.msra.mxu0 0
        %394 = vmatprep.subr.bf16.mxu0 0
        %395 = vmatpush1.bf16.msra.mxu0 0
        %396 = vmatprep.subr.bf16.mxu0 0
        %397 = vmatpush1.bf16.msra.mxu0 0
        %398 = vmatprep.subr.bf16.mxu0 0
        %399 = vmatpush1.bf16.msra.mxu0 0
        %400 = vmatprep.subr.bf16.mxu0 0
        %401 = vmatpush1.bf16.msra.mxu0 0
        %402 = vmatprep.mubr.bf16.mxu0 0
        %403 = vmatmul.mubr.bf16.gmra.mrb[0].mxu0 %v347
        %v404 = vpop.f32.mrb[0].mxu0
        %v405 = vadd.f32 %v280, %v404
        %v406 = vpop.f32.mrb[0].mxu0
        %v407 = vadd.f32 %v284, %v406
        %v408 = vpop.f32.mrb[0].mxu0
        %v409 = vadd.f32 %v280, %v408
        %v410 = vpop.f32.mrb[0].mxu0
        %v411 = vadd.f32 %v284, %v410
        %412 = vmatprep.mubr.bf16.mxu0 0
        %413 = vmatmul.mubr.bf16.gmra.mrb[0].mxu0 %v350
        %v414 = vpop.f32.mrb[0].mxu0
        %v415 = vadd.f32 %v280, %v414
        %v416 = vpop.f32.mrb[0].mxu0
        %v417 = vadd.f32 %v284, %v416
        %v418 = vpop.f32.mrb[0].mxu0
        %v419 = vadd.f32 %v280, %v418
        %v420 = vpop.f32.mrb[0].mxu0
        %v421 = vadd.f32 %v284, %v420
        %422 = vmatprep.mubr.bf16.mxu0 0
        %423 = vmatmul.mubr.bf16.gmra.mrb[0].mxu0 %v353
        %v424 = vpop.f32.mrb[0].mxu0
        %v425 = vadd.f32 %v280, %v424
        %v426 = vpop.f32.mrb[0].mxu0
        %v427 = vadd.f32 %v284, %v426
        %v428 = vpop.f32.mrb[0].mxu0
        %v429 = vadd.f32 %v280, %v428
        %v430 = vpop.f32.mrb[0].mxu0
        %v431 = vadd.f32 %v284, %v430
        %432 = vmatprep.mubr.bf16.mxu0 0
        %433 = vmatmul.mubr.bf16.gmra.mrb[0].mxu0 %v356
        %v434 = vpop.f32.mrb[0].mxu0
        %v435 = vadd.f32 %v280, %v434
        %v436 = vpop.f32.mrb[0].mxu0
        %v437 = vadd.f32 %v284, %v436
        %v438 = vpop.f32.mrb[0].mxu0
        %v439 = vadd.f32 %v280, %v438
        %v440 = vpop.f32.mrb[0].mxu0
        %v441 = vadd.f32 %v284, %v440
        %442 = vmatprep.mubr.bf16.mxu0 0
        %443 = vmatmul.mubr.bf16.gmra.mrb[0].mxu0 %v359
        %v444 = vpop.f32.mrb[0].mxu0
        %v445 = vadd.f32 %v280, %v444
        %v446 = vpop.f32.mrb[0].mxu0
        %v447 = vadd.f32 %v284, %v446
        %v448 = vpop.f32.mrb[0].mxu0
        %v449 = vadd.f32 %v280, %v448
        %v450 = vpop.f32.mrb[0].mxu0
        %v451 = vadd.f32 %v284, %v450
        %452 = vmatprep.mubr.bf16.mxu0 0
        %453 = vmatmul.mubr.bf16.gmra.mrb[0].mxu0 %v362
        %v454 = vpop.f32.mrb[0].mxu0
        %v455 = vadd.f32 %v280, %v454
        %v456 = vpop.f32.mrb[0].mxu0
        %v457 = vadd.f32 %v284, %v456
        %v458 = vpop.f32.mrb[0].mxu0
        %v459 = vadd.f32 %v280, %v458
        %v460 = vpop.f32.mrb[0].mxu0
        %v461 = vadd.f32 %v284, %v460
        %462 = vmatprep.mubr.bf16.mxu0 0
        %463 = vmatmul.mubr.bf16.gmra.mrb[0].mxu0 %v365
        %v464 = vpop.f32.mrb[0].mxu0
        %v465 = vadd.f32 %v280, %v464
        %v466 = vpop.f32.mrb[0].mxu0
        %v467 = vadd.f32 %v284, %v466
        %v468 = vpop.f32.mrb[0].mxu0
        %v469 = vadd.f32 %v280, %v468
        %v470 = vpop.f32.mrb[0].mxu0
        %v471 = vadd.f32 %v284, %v470
        %472 = vmatprep.mubr.bf16.mxu0 0
        %473 = vmatmul.mubr.bf16.gmra.mrb[0].mxu0 %v368
        %v474 = vpop.f32.mrb[0].mxu0
        %v475 = vadd.f32 %v280, %v474
        %v476 = vpop.f32.mrb[0].mxu0
        %v477 = vadd.f32 %v284, %v476
        %v478 = vpop.f32.mrb[0].mxu0
        %v479 = vadd.f32 %v280, %v478
        %v480 = vpop.f32.mrb[0].mxu0
        %v481 = vadd.f32 %v284, %v480
        %482 = vdwg.mxu0
        %v483 = vmax.f32 %v405, 0.0
        %v484 = vmax.f32 %v407, 0.0
        %v485 = vmax.f32 %v409, 0.0
        %v486 = vmax.f32 %v411, 0.0
        %v487 = vmax.f32 %v415, 0.0
        %v488 = vmax.f32 %v417, 0.0
        %v489 = vmax.f32 %v419, 0.0
        %v490 = vmax.f32 %v421, 0.0
        %v491 = vmax.f32 %v425, 0.0
        %v492 = vmax.f32 %v427, 0.0
        %v493 = vmax.f32 %v429, 0.0
        %v494 = vmax.f32 %v431, 0.0
        %v495 = vmax.f32 %v435, 0.0
        %v496 = vmax.f32 %v437, 0.0
        %v497 = vmax.f32 %v439, 0.0
        %v498 = vmax.f32 %v441, 0.0
        %v499 = vmax.f32 %v445, 0.0
        %v500 = vmax.f32 %v447, 0.0
        %v501 = vmax.f32 %v449, 0.0
        %v502 = vmax.f32 %v451, 0.0
        %v503 = vmax.f32 %v455, 0.0
        %v504 = vmax.f32 %v457, 0.0
        %v505 = vmax.f32 %v459, 0.0
        %v506 = vmax.f32 %v461, 0.0
        %v507 = vmax.f32 %v465, 0.0
        %v508 = vmax.f32 %v467, 0.0
        %v509 = vmax.f32 %v469, 0.0
        %v510 = vmax.f32 %v471, 0.0
        %v511 = vmax.f32 %v475, 0.0
        %v512 = vmax.f32 %v477, 0.0
        %v513 = vmax.f32 %v479, 0.0
        %v514 = vmax.f32 %v481, 0.0
        %v515 = vpack.c.bf16 %v485, %v483
        %v516 = vpack.c.bf16 %v486, %v484
        %v517 = vpack.c.bf16 %v489, %v487
        %v518 = vpack.c.bf16 %v490, %v488
        %v519 = vpack.c.bf16 %v493, %v491
        %v520 = vpack.c.bf16 %v494, %v492
        %v521 = vpack.c.bf16 %v497, %v495
        %v522 = vpack.c.bf16 %v498, %v496
        %v523 = vpack.c.bf16 %v501, %v499
        %v524 = vpack.c.bf16 %v502, %v500
        %v525 = vpack.c.bf16 %v505, %v503
        %v526 = vpack.c.bf16 %v506, %v504
        %v527 = vpack.c.bf16 %v509, %v507
        %v528 = vpack.c.bf16 %v510, %v508
        %v529 = vpack.c.bf16 %v513, %v511
        %v530 = vpack.c.bf16 %v514, %v512
        %v531 = vld [vmem:[#allocation2] sm:$0xff]
        %v532 = vld [vmem:[#allocation2 + $0x8] sm:$0xff]
        %v533 = vld [vmem:[#allocation2 + $0x10] sm:$0xff]
        %v534 = vld [vmem:[#allocation2 + $0x18] sm:$0xff]
        %v535 = vld [vmem:[#allocation2 + $0x20] sm:$0xff]
        %v536 = vld [vmem:[#allocation2 + $0x28] sm:$0xff]
        %v537 = vld [vmem:[#allocation2 + $0x30] sm:$0xff]
        %v538 = vld [vmem:[#allocation2 + $0x38] sm:$0xff]
        %v539 = vld [vmem:[#allocation2 + $0x40] sm:$0xff]
        %v540 = vld [vmem:[#allocation2 + $0x48] sm:$0xff]
        %v541 = vld [vmem:[#allocation2 + $0x50] sm:$0xff]
        %v542 = vld [vmem:[#allocation2 + $0x58] sm:$0xff]
        %v543 = vld [vmem:[#allocation2 + $0x60] sm:$0xff]
        %v544 = vld [vmem:[#allocation2 + $0x68] sm:$0xff]
        %v545 = vld [vmem:[#allocation2 + $0x70] sm:$0xff]
        %v546 = vld [vmem:[#allocation2 + $0x78] sm:$0xff]
        %v547 = vld [vmem:[#allocation2 + $0x80] sm:$0xff]
        %v548 = vld [vmem:[#allocation2 + $0x88] sm:$0xff]
        %v549 = vld [vmem:[#allocation2 + $0x90] sm:$0xff]
        %v550 = vld [vmem:[#allocation2 + $0x98] sm:$0xff]
        %v551 = vld [vmem:[#allocation2 + $0xa0] sm:$0xff]
        %v552 = vld [vmem:[#allocation2 + $0xa8] sm:$0xff]
        %v553 = vld [vmem:[#allocation2 + $0xb0] sm:$0xff]
        %v554 = vld [vmem:[#allocation2 + $0xb8] sm:$0xff]
        %v555 = vld [vmem:[#allocation2 + $0xc0] sm:$0xff]
        %v556 = vld [vmem:[#allocation2 + $0xc8] sm:$0xff]
        %v557 = vld [vmem:[#allocation2 + $0xd0] sm:$0xff]
        %v558 = vld [vmem:[#allocation2 + $0xd8] sm:$0xff]
        %v559 = vld [vmem:[#allocation2 + $0xe0] sm:$0xff]
        %v560 = vld [vmem:[#allocation2 + $0xe8] sm:$0xff]
        %v561 = vld [vmem:[#allocation2 + $0xf0] sm:$0xff]
        %v562 = vld [vmem:[#allocation2 + $0xf8] sm:$0xff]
        %v563 = vlaneseq
        %v564 = vshrl.u32 %v563, 7
        %v565 = vsub.s32 1, %v564
        %v566 = vrot.slane %v271, %v565
        %v567 = vlaneseq
        %v568 = vshrl.u32 %v567, 7
        %v569 = vsub.s32 1, %v568
        %v570 = vrot.slane %v272, %v569
        %v603 = vunpack.c.l.b16 %v531
        %v604 = vunpack.c.h.b16 %v531
        %v605 = vunpack.c.l.b16 %v532
        %v606 = vunpack.c.h.b16 %v532
        %v607 = vunpack.c.l.b16 %v533
        %v608 = vunpack.c.h.b16 %v533
        %v609 = vunpack.c.l.b16 %v534
        %v610 = vunpack.c.h.b16 %v534
        %v611 = vunpack.c.l.b16 %v535
        %v612 = vunpack.c.h.b16 %v535
        %v613 = vunpack.c.l.b16 %v536
        %v614 = vunpack.c.h.b16 %v536
        %v615 = vunpack.c.l.b16 %v537
        %v616 = vunpack.c.h.b16 %v537
        %v617 = vunpack.c.l.b16 %v538
        %v618 = vunpack.c.h.b16 %v538
        %v619 = vunpack.c.l.b16 %v539
        %v620 = vunpack.c.h.b16 %v539
        %v621 = vunpack.c.l.b16 %v540
        %v622 = vunpack.c.h.b16 %v540
        %v623 = vunpack.c.l.b16 %v541
        %v624 = vunpack.c.h.b16 %v541
        %v625 = vunpack.c.l.b16 %v542
        %v626 = vunpack.c.h.b16 %v542
        %v627 = vunpack.c.l.b16 %v543
        %v628 = vunpack.c.h.b16 %v543
        %v629 = vunpack.c.l.b16 %v544
        %v630 = vunpack.c.h.b16 %v544
        %v631 = vunpack.c.l.b16 %v545
        %v632 = vunpack.c.h.b16 %v545
        %v633 = vunpack.c.l.b16 %v546
        %v634 = vunpack.c.h.b16 %v546
        %v635 = vunpack.c.l.b16 %v547
        %v636 = vunpack.c.h.b16 %v547
        %v637 = vunpack.c.l.b16 %v548
        %v638 = vunpack.c.h.b16 %v548
        %v639 = vunpack.c.l.b16 %v549
        %v640 = vunpack.c.h.b16 %v549
        %v641 = vunpack.c.l.b16 %v550
        %v642 = vunpack.c.h.b16 %v550
        %v643 = vunpack.c.l.b16 %v551
        %v644 = vunpack.c.h.b16 %v551
        %v645 = vunpack.c.l.b16 %v552
        %v646 = vunpack.c.h.b16 %v552
        %v647 = vunpack.c.l.b16 %v553
        %v648 = vunpack.c.h.b16 %v553
        %v649 = vunpack.c.l.b16 %v554
        %v650 = vunpack.c.h.b16 %v554
        %v651 = vunpack.c.l.b16 %v555
        %v652 = vunpack.c.h.b16 %v555
        %v653 = vunpack.c.l.b16 %v556
        %v654 = vunpack.c.h.b16 %v556
        %v655 = vunpack.c.l.b16 %v557
        %v656 = vunpack.c.h.b16 %v557
        %v657 = vunpack.c.l.b16 %v558
        %v658 = vunpack.c.h.b16 %v558
        %v659 = vunpack.c.l.b16 %v559
        %v660 = vunpack.c.h.b16 %v559
        %v661 = vunpack.c.l.b16 %v560
        %v662 = vunpack.c.h.b16 %v560
        %v663 = vunpack.c.l.b16 %v561
        %v664 = vunpack.c.h.b16 %v561
        %v665 = vunpack.c.l.b16 %v562
        %v666 = vunpack.c.h.b16 %v562
        %v667 = vpack.c.b16 %v605, %v603
        %v668 = vpack.c.b16 %v606, %v604
        %v669 = vpack.c.b16 %v609, %v607
        %v670 = vpack.c.b16 %v610, %v608
        %v671 = vpack.c.b16 %v613, %v611
        %v672 = vpack.c.b16 %v614, %v612
        %v673 = vpack.c.b16 %v617, %v615
        %v674 = vpack.c.b16 %v618, %v616
        %v675 = vpack.c.b16 %v621, %v619
        %v676 = vpack.c.b16 %v622, %v620
        %v677 = vpack.c.b16 %v625, %v623
        %v678 = vpack.c.b16 %v626, %v624
        %v679 = vpack.c.b16 %v629, %v627
        %v680 = vpack.c.b16 %v630, %v628
        %v681 = vpack.c.b16 %v633, %v631
        %v682 = vpack.c.b16 %v634, %v632
        %v683 = vpack.c.b16 %v637, %v635
        %v684 = vpack.c.b16 %v638, %v636
        %v685 = vpack.c.b16 %v641, %v639
        %v686 = vpack.c.b16 %v642, %v640
        %v687 = vpack.c.b16 %v645, %v643
        %v688 = vpack.c.b16 %v646, %v644
        %v689 = vpack.c.b16 %v649, %v647
        %v690 = vpack.c.b16 %v650, %v648
        %v691 = vpack.c.b16 %v653, %v651
        %v692 = vpack.c.b16 %v654, %v652
        %v693 = vpack.c.b16 %v657, %v655
        %v694 = vpack.c.b16 %v658, %v656
        %v695 = vpack.c.b16 %v661, %v659
        %v696 = vpack.c.b16 %v662, %v660
        %v697 = vpack.c.b16 %v665, %v663
        %v698 = vpack.c.b16 %v666, %v664
        %731 = vmatprep.subr.bf16.mxu0 %v668
        %732 = vmatpush1.bf16.msra.mxu0 %v667
        %733 = vmatprep.subr.bf16.mxu0 %v670
        %734 = vmatpush1.bf16.msra.mxu0 %v669
        %735 = vmatprep.subr.bf16.mxu0 %v672
        %736 = vmatpush1.bf16.msra.mxu0 %v671
        %737 = vmatprep.subr.bf16.mxu0 %v674
        %738 = vmatpush1.bf16.msra.mxu0 %v673
        %739 = vmatprep.subr.bf16.mxu0 %v676
        %740 = vmatpush1.bf16.msra.mxu0 %v675
        %741 = vmatprep.subr.bf16.mxu0 %v678
        %742 = vmatpush1.bf16.msra.mxu0 %v677
        %743 = vmatprep.subr.bf16.mxu0 %v680
        %744 = vmatpush1.bf16.msra.mxu0 %v679
        %745 = vmatprep.subr.bf16.mxu0 %v682
        %746 = vmatpush1.bf16.msra.mxu0 %v681
        %747 = vmatprep.subr.bf16.mxu0 %v684
        %748 = vmatpush1.bf16.msra.mxu0 %v683
        %749 = vmatprep.subr.bf16.mxu0 %v686
        %750 = vmatpush1.bf16.msra.mxu0 %v685
        %751 = vmatprep.subr.bf16.mxu0 %v688
        %752 = vmatpush1.bf16.msra.mxu0 %v687
        %753 = vmatprep.subr.bf16.mxu0 %v690
        %754 = vmatpush1.bf16.msra.mxu0 %v689
        %755 = vmatprep.subr.bf16.mxu0 %v692
        %756 = vmatpush1.bf16.msra.mxu0 %v691
        %757 = vmatprep.subr.bf16.mxu0 %v694
        %758 = vmatpush1.bf16.msra.mxu0 %v693
        %759 = vmatprep.subr.bf16.mxu0 %v696
        %760 = vmatpush1.bf16.msra.mxu0 %v695
        %761 = vmatprep.subr.bf16.mxu0 %v698
        %762 = vmatpush1.bf16.msra.mxu0 %v697
        %763 = vmatprep.mubr.bf16.mxu0 %v516
        %764 = vmatmul.mubr.bf16.gmra.mrb[0].mxu0 %v515
        %v765 = vpop.f32.mrb[0].mxu0
        %v766 = vadd.f32 %v566, %v765
        %v767 = vpop.f32.mrb[0].mxu0
        %v768 = vadd.f32 %v570, %v767
        %v769 = vpop.f32.mrb[0].mxu0
        %v770 = vadd.f32 %v566, %v769
        %v771 = vpop.f32.mrb[0].mxu0
        %v772 = vadd.f32 %v570, %v771
        %773 = vmatprep.mubr.bf16.mxu0 %v518
        %774 = vmatmul.mubr.bf16.gmra.mrb[0].mxu0 %v517
        %v775 = vpop.f32.mrb[0].mxu0
        %v776 = vadd.f32 %v566, %v775
        %v777 = vpop.f32.mrb[0].mxu0
        %v778 = vadd.f32 %v570, %v777
        %v779 = vpop.f32.mrb[0].mxu0
        %v780 = vadd.f32 %v566, %v779
        %v781 = vpop.f32.mrb[0].mxu0
        %v782 = vadd.f32 %v570, %v781
        %783 = vmatprep.mubr.bf16.mxu0 %v520
        %784 = vmatmul.mubr.bf16.gmra.mrb[0].mxu0 %v519
        %v785 = vpop.f32.mrb[0].mxu0
        %v786 = vadd.f32 %v566, %v785
        %v787 = vpop.f32.mrb[0].mxu0
        %v788 = vadd.f32 %v570, %v787
        %v789 = vpop.f32.mrb[0].mxu0
        %v790 = vadd.f32 %v566, %v789
        %v791 = vpop.f32.mrb[0].mxu0
        %v792 = vadd.f32 %v570, %v791
        %793 = vmatprep.mubr.bf16.mxu0 %v522
        %794 = vmatmul.mubr.bf16.gmra.mrb[0].mxu0 %v521
        %v795 = vpop.f32.mrb[0].mxu0
        %v796 = vadd.f32 %v566, %v795
        %v797 = vpop.f32.mrb[0].mxu0
        %v798 = vadd.f32 %v570, %v797
        %v799 = vpop.f32.mrb[0].mxu0
        %v800 = vadd.f32 %v566, %v799
        %v801 = vpop.f32.mrb[0].mxu0
        %v802 = vadd.f32 %v570, %v801
        %803 = vmatprep.mubr.bf16.mxu0 %v524
        %804 = vmatmul.mubr.bf16.gmra.mrb[0].mxu0 %v523
        %v805 = vpop.f32.mrb[0].mxu0
        %v806 = vadd.f32 %v566, %v805
        %v807 = vpop.f32.mrb[0].mxu0
        %v808 = vadd.f32 %v570, %v807
        %v809 = vpop.f32.mrb[0].mxu0
        %v810 = vadd.f32 %v566, %v809
        %v811 = vpop.f32.mrb[0].mxu0
        %v812 = vadd.f32 %v570, %v811
        %813 = vmatprep.mubr.bf16.mxu0 %v526
        %814 = vmatmul.mubr.bf16.gmra.mrb[0].mxu0 %v525
        %v815 = vpop.f32.mrb[0].mxu0
        %v816 = vadd.f32 %v566, %v815
        %v817 = vpop.f32.mrb[0].mxu0
        %v818 = vadd.f32 %v570, %v817
        %v819 = vpop.f32.mrb[0].mxu0
        %v820 = vadd.f32 %v566, %v819
        %v821 = vpop.f32.mrb[0].mxu0
        %v822 = vadd.f32 %v570, %v821
        %823 = vmatprep.mubr.bf16.mxu0 %v528
        %824 = vmatmul.mubr.bf16.gmra.mrb[0].mxu0 %v527
        %v825 = vpop.f32.mrb[0].mxu0
        %v826 = vadd.f32 %v566, %v825
        %v827 = vpop.f32.mrb[0].mxu0
        %v828 = vadd.f32 %v570, %v827
        %v829 = vpop.f32.mrb[0].mxu0
        %v830 = vadd.f32 %v566, %v829
        %v831 = vpop.f32.mrb[0].mxu0
        %v832 = vadd.f32 %v570, %v831
        %833 = vmatprep.mubr.bf16.mxu0 %v530
        %834 = vmatmul.mubr.bf16.gmra.mrb[0].mxu0 %v529
        %v835 = vpop.f32.mrb[0].mxu0
        %v836 = vadd.f32 %v566, %v835
        %v837 = vpop.f32.mrb[0].mxu0
        %v838 = vadd.f32 %v570, %v837
        %v839 = vpop.f32.mrb[0].mxu0
        %v840 = vadd.f32 %v566, %v839
        %v841 = vpop.f32.mrb[0].mxu0
        %v842 = vadd.f32 %v570, %v841
        %843 = vdwg.mxu0
        %v844 = vmax.f32 %v766, 0.0
        %v845 = vmax.f32 %v768, 0.0
        %v846 = vmax.f32 %v770, 0.0
        %v847 = vmax.f32 %v772, 0.0
        %v848 = vmax.f32 %v776, 0.0
        %v849 = vmax.f32 %v778, 0.0
        %v850 = vmax.f32 %v780, 0.0
        %v851 = vmax.f32 %v782, 0.0
        %v852 = vmax.f32 %v786, 0.0
        %v853 = vmax.f32 %v788, 0.0
        %v854 = vmax.f32 %v790, 0.0
        %v855 = vmax.f32 %v792, 0.0
        %v856 = vmax.f32 %v796, 0.0
        %v857 = vmax.f32 %v798, 0.0
        %v858 = vmax.f32 %v800, 0.0
        %v859 = vmax.f32 %v802, 0.0
        %v860 = vmax.f32 %v806, 0.0
        %v861 = vmax.f32 %v808, 0.0
        %v862 = vmax.f32 %v810, 0.0
        %v863 = vmax.f32 %v812, 0.0
        %v864 = vmax.f32 %v816, 0.0
        %v865 = vmax.f32 %v818, 0.0
        %v866 = vmax.f32 %v820, 0.0
        %v867 = vmax.f32 %v822, 0.0
        %v868 = vmax.f32 %v826, 0.0
        %v869 = vmax.f32 %v828, 0.0
        %v870 = vmax.f32 %v830, 0.0
        %v871 = vmax.f32 %v832, 0.0
        %v872 = vmax.f32 %v836, 0.0
        %v873 = vmax.f32 %v838, 0.0
        %v874 = vmax.f32 %v840, 0.0
        %v875 = vmax.f32 %v842, 0.0
        %v876 = vpack.c.bf16 %v846, %v844
        %v877 = vpack.c.bf16 %v847, %v845
        %v878 = vpack.c.bf16 %v850, %v848
        %v879 = vpack.c.bf16 %v851, %v849
        %v880 = vpack.c.bf16 %v854, %v852
        %v881 = vpack.c.bf16 %v855, %v853
        %v882 = vpack.c.bf16 %v858, %v856
        %v883 = vpack.c.bf16 %v859, %v857
        %v884 = vpack.c.bf16 %v862, %v860
        %v885 = vpack.c.bf16 %v863, %v861
        %v886 = vpack.c.bf16 %v866, %v864
        %v887 = vpack.c.bf16 %v867, %v865
        %v888 = vpack.c.bf16 %v870, %v868
        %v889 = vpack.c.bf16 %v871, %v869
        %v890 = vpack.c.bf16 %v874, %v872
        %v891 = vpack.c.bf16 %v875, %v873
        %v892 = vld [vmem:[%s3] sm:$0xf]
        %v893 = vld [vmem:[%s3 + $0x4] sm:$0xf]
        %v894 = vld [vmem:[%s3 + $0x8] sm:$0xf]
        %v895 = vld [vmem:[%s3 + $0xc] sm:$0xf]
        %v896 = vld [vmem:[%s3 + $0x10] sm:$0xf]
        %v897 = vld [vmem:[%s3 + $0x14] sm:$0xf]
        %v898 = vld [vmem:[%s3 + $0x18] sm:$0xf]
        %v899 = vld [vmem:[%s3 + $0x1c] sm:$0xf]
        %v900 = vld [vmem:[%s3 + $0x20] sm:$0xf]
        %v901 = vld [vmem:[%s3 + $0x24] sm:$0xf]
        %v902 = vld [vmem:[%s3 + $0x28] sm:$0xf]
        %v903 = vld [vmem:[%s3 + $0x2c] sm:$0xf]
        %v904 = vld [vmem:[%s3 + $0x30] sm:$0xf]
        %v905 = vld [vmem:[%s3 + $0x34] sm:$0xf]
        %v906 = vld [vmem:[%s3 + $0x38] sm:$0xf]
        %v907 = vld [vmem:[%s3 + $0x3c] sm:$0xf]
        %v908 = vld [vmem:[%s3 + $0x40] sm:$0xf]
        %v909 = vld [vmem:[%s3 + $0x44] sm:$0xf]
        %v910 = vld [vmem:[%s3 + $0x48] sm:$0xf]
        %v911 = vld [vmem:[%s3 + $0x4c] sm:$0xf]
        %v912 = vld [vmem:[%s3 + $0x50] sm:$0xf]
        %v913 = vld [vmem:[%s3 + $0x54] sm:$0xf]
        %v914 = vld [vmem:[%s3 + $0x58] sm:$0xf]
        %v915 = vld [vmem:[%s3 + $0x5c] sm:$0xf]
        %v916 = vld [vmem:[%s3 + $0x60] sm:$0xf]
        %v917 = vld [vmem:[%s3 + $0x64] sm:$0xf]
        %v918 = vld [vmem:[%s3 + $0x68] sm:$0xf]
        %v919 = vld [vmem:[%s3 + $0x6c] sm:$0xf]
        %v920 = vld [vmem:[%s3 + $0x70] sm:$0xf]
        %v921 = vld [vmem:[%s3 + $0x74] sm:$0xf]
        %v922 = vld [vmem:[%s3 + $0x78] sm:$0xf]
        %v923 = vld [vmem:[%s3 + $0x7c] sm:$0xf]
        %v924 = vlaneseq
        %v925 = vshrl.u32 %v924, 7
        %v926 = vsub.s32 2, %v925
        %v927 = vrot.slane %v271, %v926
        %v960 = vunpack.c.l.b16 %v892
        %v961 = vunpack.c.l.b16 %v893
        %v962 = vunpack.c.l.b16 %v894
        %v963 = vunpack.c.l.b16 %v895
        %v964 = vunpack.c.l.b16 %v896
        %v965 = vunpack.c.l.b16 %v897
        %v966 = vunpack.c.l.b16 %v898
        %v967 = vunpack.c.l.b16 %v899
        %v968 = vunpack.c.l.b16 %v900
        %v969 = vunpack.c.l.b16 %v901
        %v970 = vunpack.c.l.b16 %v902
        %v971 = vunpack.c.l.b16 %v903
        %v972 = vunpack.c.l.b16 %v904
        %v973 = vunpack.c.l.b16 %v905
        %v974 = vunpack.c.l.b16 %v906
        %v975 = vunpack.c.l.b16 %v907
        %v976 = vunpack.c.l.b16 %v908
        %v977 = vunpack.c.l.b16 %v909
        %v978 = vunpack.c.l.b16 %v910
        %v979 = vunpack.c.l.b16 %v911
        %v980 = vunpack.c.l.b16 %v912
        %v981 = vunpack.c.l.b16 %v913
        %v982 = vunpack.c.l.b16 %v914
        %v983 = vunpack.c.l.b16 %v915
        %v984 = vunpack.c.l.b16 %v916
        %v985 = vunpack.c.l.b16 %v917
        %v986 = vunpack.c.l.b16 %v918
        %v987 = vunpack.c.l.b16 %v919
        %v988 = vunpack.c.l.b16 %v920
        %v989 = vunpack.c.l.b16 %v921
        %v990 = vunpack.c.l.b16 %v922
        %v991 = vunpack.c.l.b16 %v923
        %v992 = vpack.c.b16 %v961, %v960
        %v993 = vpack.c.b16 %v963, %v962
        %v994 = vpack.c.b16 %v965, %v964
        %v995 = vpack.c.b16 %v967, %v966
        %v996 = vpack.c.b16 %v969, %v968
        %v997 = vpack.c.b16 %v971, %v970
        %v998 = vpack.c.b16 %v973, %v972
        %v999 = vpack.c.b16 %v975, %v974
        %v1000 = vpack.c.b16 %v977, %v976
        %v1001 = vpack.c.b16 %v979, %v978
        %v1002 = vpack.c.b16 %v981, %v980
        %v1003 = vpack.c.b16 %v983, %v982
        %v1004 = vpack.c.b16 %v985, %v984
        %v1005 = vpack.c.b16 %v987, %v986
        %v1006 = vpack.c.b16 %v989, %v988
        %v1007 = vpack.c.b16 %v991, %v990
        %1024 = vmatprep.subr.bf16.mxu0 0
        %1025 = vmatpush1.bf16.msra.mxu0 %v992
        %1026 = vmatprep.subr.bf16.mxu0 0
        %1027 = vmatpush1.bf16.msra.mxu0 %v993
        %1028 = vmatprep.subr.bf16.mxu0 0
        %1029 = vmatpush1.bf16.msra.mxu0 %v994
        %1030 = vmatprep.subr.bf16.mxu0 0
        %1031 = vmatpush1.bf16.msra.mxu0 %v995
        %1032 = vmatprep.subr.bf16.mxu0 0
        %1033 = vmatpush1.bf16.msra.mxu0 %v996
        %1034 = vmatprep.subr.bf16.mxu0 0
        %1035 = vmatpush1.bf16.msra.mxu0 %v997
        %1036 = vmatprep.subr.bf16.mxu0 0
        %1037 = vmatpush1.bf16.msra.mxu0 %v998
        %1038 = vmatprep.subr.bf16.mxu0 0
        %1039 = vmatpush1.bf16.msra.mxu0 %v999
        %1040 = vmatprep.subr.bf16.mxu0 0
        %1041 = vmatpush1.bf16.msra.mxu0 %v1000
        %1042 = vmatprep.subr.bf16.mxu0 0
        %1043 = vmatpush1.bf16.msra.mxu0 %v1001
        %1044 = vmatprep.subr.bf16.mxu0 0
        %1045 = vmatpush1.bf16.msra.mxu0 %v1002
        %1046 = vmatprep.subr.bf16.mxu0 0
        %1047 = vmatpush1.bf16.msra.mxu0 %v1003
        %1048 = vmatprep.subr.bf16.mxu0 0
        %1049 = vmatpush1.bf16.msra.mxu0 %v1004
        %1050 = vmatprep.subr.bf16.mxu0 0
        %1051 = vmatpush1.bf16.msra.mxu0 %v1005
        %1052 = vmatprep.subr.bf16.mxu0 0
        %1053 = vmatpush1.bf16.msra.mxu0 %v1006
        %1054 = vmatprep.subr.bf16.mxu0 0
        %1055 = vmatpush1.bf16.msra.mxu0 %v1007
        %1056 = vmatprep.mubr.bf16.mxu0 %v877
        %1057 = vmatmul.mubr.bf16.gmra.mrb[0].mxu0 %v876
        %v1058 = vpop.f32.mrb[0].mxu0
        %v1059 = vadd.f32 %v927, %v1058
        %v1060 = vpop.f32.mrb[0].mxu0
        %v1061 = vpop.f32.mrb[0].mxu0
        %v1062 = vadd.f32 %v927, %v1061
        %v1063 = vpop.f32.mrb[0].mxu0
        %1064 = vmatprep.mubr.bf16.mxu0 %v879
        %1065 = vmatmul.mubr.bf16.gmra.mrb[0].mxu0 %v878
        %v1066 = vpop.f32.mrb[0].mxu0
        %v1067 = vadd.f32 %v927, %v1066
        %v1068 = vpop.f32.mrb[0].mxu0
        %v1069 = vpop.f32.mrb[0].mxu0
        %v1070 = vadd.f32 %v927, %v1069
        %v1071 = vpop.f32.mrb[0].mxu0
        %1072 = vmatprep.mubr.bf16.mxu0 %v881
        %1073 = vmatmul.mubr.bf16.gmra.mrb[0].mxu0 %v880
        %v1074 = vpop.f32.mrb[0].mxu0
        %v1075 = vadd.f32 %v927, %v1074
        %v1076 = vpop.f32.mrb[0].mxu0
        %v1077 = vpop.f32.mrb[0].mxu0
        %v1078 = vadd.f32 %v927, %v1077
        %v1079 = vpop.f32.mrb[0].mxu0
        %1080 = vmatprep.mubr.bf16.mxu0 %v883
        %1081 = vmatmul.mubr.bf16.gmra.mrb[0].mxu0 %v882
        %v1082 = vpop.f32.mrb[0].mxu0
        %v1083 = vadd.f32 %v927, %v1082
        %v1084 = vpop.f32.mrb[0].mxu0
        %v1085 = vpop.f32.mrb[0].mxu0
        %v1086 = vadd.f32 %v927, %v1085
        %v1087 = vpop.f32.mrb[0].mxu0
        %1088 = vmatprep.mubr.bf16.mxu0 %v885
        %1089 = vmatmul.mubr.bf16.gmra.mrb[0].mxu0 %v884
        %v1090 = vpop.f32.mrb[0].mxu0
        %v1091 = vadd.f32 %v927, %v1090
        %v1092 = vpop.f32.mrb[0].mxu0
        %v1093 = vpop.f32.mrb[0].mxu0
        %v1094 = vadd.f32 %v927, %v1093
        %v1095 = vpop.f32.mrb[0].mxu0
        %1096 = vmatprep.mubr.bf16.mxu0 %v887
        %1097 = vmatmul.mubr.bf16.gmra.mrb[0].mxu0 %v886
        %v1098 = vpop.f32.mrb[0].mxu0
        %v1099 = vadd.f32 %v927, %v1098
        %v1100 = vpop.f32.mrb[0].mxu0
        %v1101 = vpop.f32.mrb[0].mxu0
        %v1102 = vadd.f32 %v927, %v1101
        %v1103 = vpop.f32.mrb[0].mxu0
        %1104 = vmatprep.mubr.bf16.mxu0 %v889
        %1105 = vmatmul.mubr.bf16.gmra.mrb[0].mxu0 %v888
        %v1106 = vpop.f32.mrb[0].mxu0
        %v1107 = vadd.f32 %v927, %v1106
        %v1108 = vpop.f32.mrb[0].mxu0
        %v1109 = vpop.f32.mrb[0].mxu0
        %v1110 = vadd.f32 %v927, %v1109
        %v1111 = vpop.f32.mrb[0].mxu0
        %1112 = vmatprep.mubr.bf16.mxu0 %v891
        %1113 = vmatmul.mubr.bf16.gmra.mrb[0].mxu0 %v890
        %v1114 = vpop.f32.mrb[0].mxu0
        %v1115 = vadd.f32 %v927, %v1114
        %v1116 = vpop.f32.mrb[0].mxu0
        %v1117 = vpop.f32.mrb[0].mxu0
        %v1118 = vadd.f32 %v927, %v1117
        %v1119 = vpop.f32.mrb[0].mxu0
        %1120 = vdwg.mxu0
        %1121 = vst [vmem:[%s246] sm:$0xff] %v1059
        %1122 = vst [vmem:[%s246 + $0x8] sm:$0xff] %v1062
        %1123 = vst [vmem:[%s246 + $0x10] sm:$0xff] %v1067
        %1124 = vst [vmem:[%s246 + $0x18] sm:$0xff] %v1070
        %1125 = vst [vmem:[%s246 + $0x20] sm:$0xff] %v1075
        %1126 = vst [vmem:[%s246 + $0x28] sm:$0xff] %v1078
        %1127 = vst [vmem:[%s246 + $0x30] sm:$0xff] %v1083
        %1128 = vst [vmem:[%s246 + $0x38] sm:$0xff] %v1086
        %1129 = vst [vmem:[%s246 + $0x40] sm:$0xff] %v1091
        %1130 = vst [vmem:[%s246 + $0x48] sm:$0xff] %v1094
        %1131 = vst [vmem:[%s246 + $0x50] sm:$0xff] %v1099
        %1132 = vst [vmem:[%s246 + $0x58] sm:$0xff] %v1102
        %1133 = vst [vmem:[%s246 + $0x60] sm:$0xff] %v1107
        %1134 = vst [vmem:[%s246 + $0x68] sm:$0xff] %v1110
        %1135 = vst [vmem:[%s246 + $0x70] sm:$0xff] %v1115
        %1136 = vst [vmem:[%s246 + $0x78] sm:$0xff] %v1118
        %s1137 = sand.u32 %s139, 1
        %s1138 = scalar_lea.sflag [#allocation4], %s1137
        %s1139 = sand.u32 %s139, 1
        %s1140 = smul.addr %s1139, 128
        %s1141 = scalar_lea.vmem [#allocation7], %s1140
        // Predicated region
        $region49: #{tpu_custom_call.1} parent=39 // pred_check
          %p1142 = pneg %p149
        $region50: #{tpu_custom_call.1} parent=39 // pred_check_branch
          %1144 = sbr.rel (%p1142) target = $region52
        $region51: #{tpu_custom_call.1} parent=39 // pred_region
          %s1145 = smul.u32 16, %s21
          %s1147 = ssub.s32 2048, 2048
          %1148 = vsyncadd %s1138, %s1147
          %s1149 = smul.addr %s1145, 128
          %s1150 = scalar_lea.hbm %s5, %s1149
          %s1151 = sshll.u32 %s1141, 4
          %s1152 = int_to_ptr.vmem [resolvable:$true] %s1151
          %1157 = dma.vmem_to_hbm [thread:$0]  %s1152, 2048, %s1150, %s1138, 128, 128, 8
        $region52: #{tpu_custom_call.1} parent=39 // pred_fallthru
          _
      $region40: #{tpu_custom_call.1} parent=5 // pred_fallthru
        _
      %p1158 = scmp.le.s32.totalorder 2, %s16
      // Predicated region
      $region53: #{tpu_custom_call.1} parent=5 // pred_check
        %p1159 = pneg %p1158
      $region54: #{tpu_custom_call.1} parent=5 // pred_check_branch
        %1161 = sbr.rel (%p1159) target = $region56
      $region55: #{tpu_custom_call.1} parent=5 // pred_region
        %s1162 = ssub.s32 %s16, 2
        // Predicated region
        $region57: #{tpu_custom_call.1} parent=55 // pred_check
          %p1163 = pneg %p155
        $region58: #{tpu_custom_call.1} parent=55 // pred_check_branch
          %1165 = sbr.rel (%p1163) target = $region60
        $region59: #{tpu_custom_call.1} parent=55 // pred_region
          %s1166 = sand.u32 %s140, 1
          %s1167 = scalar_lea.sflag [#allocation4], %s1166
          %s1168 = sand.u32 %s140, 1
          %s1169 = smul.addr %s1168, 128
          %s1170 = scalar_lea.vmem [#allocation7], %s1169
          %1171 = dma.done %s1167, 2048
        $region60: #{tpu_custom_call.1} parent=55 // pred_fallthru
          _
      $region56: #{tpu_custom_call.1} parent=5 // pred_fallthru
        _
    $region6: #{tpu_custom_call.1} parent=1 // loop_footer
      %s20 = sadd.s32 1, %s16
    $region7: #{tpu_custom_call.1} parent=1 // loop_footer_branch
      %15 = sbr.rel target = $region3
    $region8: #{tpu_custom_call.1} parent=1 // loop_exit
      _
    %1172 = vsyncpa [#allocation3], 1
    %s1173 = scalar_lea.sflag [#allocation3], 1
    %1174 = vsyncpa %s1173, 1
    %1175 = vsyncpa [#allocation6], 1
    %1176 = vsyncpa [#allocation4], 1
    %s1177 = scalar_lea.sflag [#allocation4], 1
    %1178 = vsyncpa %s1177, 1

</llo_original>
